<compile_context>
chip_gen: v5e
topology: v5e:2x2
jax: 0.10.0
libtpu: 0.0.40
codegen_flags: <defaults>
</compile_context>

<pallas_src>
import functools

import jax
import jax.numpy as jnp
from jax.experimental import pallas as pl
from jax.experimental.pallas import tpu as pltpu


def _round_up(x, m):
    return (x + m - 1) // m * m


def _ffn_kernel(x_ref, w1_ref, b1_ref, w2_ref, b2_ref, gamma_ref, beta_ref,
                o_ref, acc_ref, *, inv_d, eps):
    k = pl.program_id(1)

    @pl.when(k == 0)
    def _():
        acc_ref[...] = jnp.zeros_like(acc_ref)

    # fc1 (this hidden slice) + ReLU. bf16 MXU inputs, f32 accumulation.
    x_bf = x_ref[...].astype(jnp.bfloat16)
    h = jnp.dot(x_bf, w1_ref[...], preferred_element_type=jnp.float32)
    h = jnp.maximum(h + b1_ref[...], 0.0)                       # (tm, th) f32

    # fc2 partial product, accumulated over hidden tiles.
    acc_ref[...] += jnp.dot(h.astype(jnp.bfloat16), w2_ref[...],
                            preferred_element_type=jnp.float32)  # (tm, D) f32

    @pl.when(k == pl.num_programs(1) - 1)
    def _():
        x = x_ref[...].astype(jnp.float32)
        # dropout(p=0.0) is identity at inference; residual add.
        # TODO(synk): dropout with p > 0 would need pltpu.prng_seed + prng_random_bits masking.
        out = acc_ref[...] + b2_ref[...] + x

        # LayerNorm over the last (lane) axis, eps matches torch default.
        mean = jnp.sum(out, axis=-1, keepdims=True) * inv_d
        centered = out - mean
        var = jnp.sum(centered * centered, axis=-1, keepdims=True) * inv_d
        normed = centered * jax.lax.rsqrt(var + eps)
        o_ref[...] = (normed * gamma_ref[...] + beta_ref[...]).astype(o_ref.dtype)


def position_wise_feed_forward(x, w1, b1, w2, b2, gamma, beta, *,
                               tile_m=256, tile_h=512, eps=1e-5):
    """x: (batch, seq, dim_model). Returns same shape/dtype."""
    B, S, D = x.shape
    H = w1.shape[1]
    M = B * S
    x2d = x.reshape(M, D)

    # Row tile: big enough to feed the MXU; respect dtype sublane minimum; pad rows if needed.
    min_tm = 16 if x.dtype == jnp.bfloat16 else 8
    tm = min(_round_up(tile_m, min_tm), _round_up(M, min_tm))
    Mp = _round_up(M, tm)
    if Mp != M:
        x2d = jnp.pad(x2d, ((0, Mp - M), (0, 0)))

    # Hidden tile: stream w1/w2 in K-slices (falls back to full H for small/odd H).
    th = tile_h if (H % tile_h == 0) else H

    # bf16 weights: native MXU input dtype, half the HBM->VMEM bytes.
    w1b = w1.astype(jnp.bfloat16)
    w2b = w2.astype(jnp.bfloat16)
    b1r = b1.reshape(1, H).astype(jnp.float32)
    b2r = b2.reshape(1, D).astype(jnp.float32)
    gr = gamma.reshape(1, D).astype(jnp.float32)
    br = beta.reshape(1, D).astype(jnp.float32)

    grid = (Mp // tm, H // th)

    xb = x.dtype.itemsize
    vmem_est = (2 * tm * D * xb          # x tile (double buffered)
                + 2 * D * th * 2         # w1 tile (bf16, double buffered)
                + 2 * th * 4             # b1 tile
                + 2 * th * D * 2         # w2 tile (bf16, double buffered)
                + 3 * D * 4              # b2 / gamma / beta
                + 2 * tm * D * xb        # output tile
                + tm * D * 4)            # f32 accumulator scratch
    vmem_limit = min(100 * 1024 * 1024, max(32 * 1024 * 1024, int(vmem_est * 2)))

    cost = pl.CostEstimate(
        flops=4 * Mp * D * H,                       # two (M,D,H) matmuls, 2 flops/MAC
        transcendentals=Mp,                         # one rsqrt per row
        bytes_accessed=(2 * Mp * D * xb             # x in + out
                        + 2 * D * H * 2             # bf16 weights
                        + (H + 3 * D) * 4),         # biases + LN params
    )

    kernel = functools.partial(_ffn_kernel, inv_d=float(1.0 / D), eps=float(eps))

    out2d = pl.pallas_call(
        kernel,
        out_shape=jax.ShapeDtypeStruct((Mp, D), x.dtype),
        grid=grid,
        in_specs=[
            pl.BlockSpec((tm, D), lambda i, k: (i, 0)),   # x row tile
            pl.BlockSpec((D, th), lambda i, k: (0, k)),   # w1 (bf16), streamed over H
            pl.BlockSpec((1, th), lambda i, k: (0, k)),   # b1 slice
            pl.BlockSpec((th, D), lambda i, k: (k, 0)),   # w2 (bf16), streamed over H
            pl.BlockSpec((1, D), lambda i, k: (0, 0)),    # b2
            pl.BlockSpec((1, D), lambda i, k: (0, 0)),    # layer_norm weight
            pl.BlockSpec((1, D), lambda i, k: (0, 0)),    # layer_norm bias
        ],
        out_specs=pl.BlockSpec((tm, D), lambda i, k: (i, 0)),
        scratch_shapes=[pltpu.VMEM((tm, D), jnp.float32)],
        compiler_params=pltpu.CompilerParams(
            dimension_semantics=("parallel", "arbitrary"),
            vmem_limit_bytes=vmem_limit),
        cost_estimate=cost,
    )(x2d, w1b, b1r, w2b, b2r, gr, br)

    return out2d[:M].reshape(B, S, D)


def _init_params(key, dim_model, hidden):
    """Deterministic init mimicking torch.nn.Linear (uniform +/- 1/sqrt(fan_in))."""
    k1, k2, k3, k4 = jax.random.split(key, 4)
    bound1 = 1.0 / (dim_model ** 0.5)
    bound2 = 1.0 / (hidden ** 0.5)
    w1 = jax.random.uniform(k1, (dim_model, hidden), jnp.float32, -bound1, bound1)
    b1 = jax.random.uniform(k2, (hidden,), jnp.float32, -bound1, bound1)
    w2 = jax.random.uniform(k3, (hidden, dim_model), jnp.float32, -bound2, bound2)
    b2 = jax.random.uniform(k4, (dim_model,), jnp.float32, -bound2, bound2)
    gamma = jnp.ones((dim_model,), jnp.float32)
    beta = jnp.zeros((dim_model,), jnp.float32)
    return w1, b1, w2, b2, gamma, beta


def _layer_norm(out, gamma, beta, eps=1e-5):
    mean = out.mean(-1, keepdims=True)
    var = ((out - mean) ** 2).mean(-1, keepdims=True)
    return (out - mean) / jnp.sqrt(var + eps) * gamma + beta


def _reference_f32(x, w1, b1, w2, b2, gamma, beta):
    h = jnp.maximum(x @ w1 + b1, 0.0)
    out = h @ w2 + b2 + x
    return _layer_norm(out, gamma, beta)


def _reference_bf16_matmul(x, w1, b1, w2, b2, gamma, beta):
    """Matches the kernel's numerics: bf16 matmul inputs, f32 accumulation / LN."""
    h = jnp.dot(x.astype(jnp.bfloat16), w1.astype(jnp.bfloat16),
                preferred_element_type=jnp.float32) + b1
    h = jnp.maximum(h, 0.0)
    out = jnp.dot(h.astype(jnp.bfloat16), w2.astype(jnp.bfloat16),
                  preferred_element_type=jnp.float32) + b2 + x
    return _layer_norm(out, gamma, beta)


if __name__ == "__main__":
    batch, seq, dim_model, hidden = 2, 8, 32, 64

    key = jax.random.PRNGKey(0)
    kx, kp = jax.random.split(key)
    x = jax.random.normal(kx, (batch, seq, dim_model), jnp.float32)
    w1, b1, w2, b2, gamma, beta = _init_params(kp, dim_model, hidden)

    out = position_wise_feed_forward(x, w1, b1, w2, b2, gamma, beta)
    out = jax.block_until_ready(out)

    assert out.shape == x.shape and out.dtype == x.dtype

    # Tight check against a reference with identical bf16-matmul numerics.
    ref_bf = _reference_bf16_matmul(x, w1, b1, w2, b2, gamma, beta)
    assert jnp.allclose(out, ref_bf, atol=2e-3, rtol=2e-3), "mismatch vs bf16-matched reference"

    # Loose sanity check against the full-f32 reference (bf16 matmul inputs => looser tolerance).
    ref32 = _reference_f32(x, w1, b1, w2, b2, gamma, beta)
    assert float(jnp.max(jnp.abs(out - ref32))) < 0.15, "mismatch vs f32 reference"

    print("KERNEL_OK")
</pallas_src>

<mosaic_0001>
module attributes {stable_mosaic.version = 11 : i64} {
  func.func @_ffn_kernel(%arg0: i32, %arg1: i32, %arg2: memref<16x32xf32, #tpu.memory_space<vmem>>, %arg3: memref<32x64xbf16, #tpu.memory_space<vmem>>, %arg4: memref<1x64xf32, #tpu.memory_space<vmem>>, %arg5: memref<64x32xbf16, #tpu.memory_space<vmem>>, %arg6: memref<1x32xf32, #tpu.memory_space<vmem>>, %arg7: memref<1x32xf32, #tpu.memory_space<vmem>>, %arg8: memref<1x32xf32, #tpu.memory_space<vmem>>, %arg9: memref<16x32xf32, #tpu.memory_space<vmem>>, %arg10: memref<16x32xf32, #tpu.memory_space<vmem>>) attributes {dimension_semantics = [#tpu.dimension_semantics<parallel>, #tpu.dimension_semantics<arbitrary>], iteration_bounds = array<i64: 1, 1>, scalar_prefetch = 0 : i64, scratch_operands = 1 : i64, tpu.core_type = #tpu.core_type<tc>, window_params = [{transform_indices = @transform_0, window_bounds = array<i64: 16, 32>}, {transform_indices = @transform_1, window_bounds = array<i64: 32, 64>}, {transform_indices = @transform_2, window_bounds = array<i64: 1, 64>}, {transform_indices = @transform_3, window_bounds = array<i64: 64, 32>}, {pipeline_mode = #tpu.pipeline_mode<synchronous>, transform_indices = @transform_4, window_bounds = array<i64: 1, 32>}, {pipeline_mode = #tpu.pipeline_mode<synchronous>, transform_indices = @transform_5, window_bounds = array<i64: 1, 32>}, {pipeline_mode = #tpu.pipeline_mode<synchronous>, transform_indices = @transform_6, window_bounds = array<i64: 1, 32>}, {transform_indices = @transform_7, window_bounds = array<i64: 16, 32>}]} {
    %c0_i32 = arith.constant 0 : i32
    %0 = arith.cmpi eq, %arg1, %c0_i32 : i32
    %1 = arith.extui %0 : i1 to i32
    %c0_i32_0 = arith.constant 0 : i32
    %2 = arith.cmpi ne, %1, %c0_i32_0 : i32
    scf.if %2 {
      %cst_16 = arith.constant 0.000000e+00 : f32
      %21 = vector.broadcast %cst_16 : f32 to vector<16x32xf32>
      %c0_17 = arith.constant 0 : index
      %c0_18 = arith.constant 0 : index
      %22 = vector.load %arg10[%c0_17, %c0_18] : memref<16x32xf32, #tpu.memory_space<vmem>>, vector<16x32xf32>
      tpu.vector_store %arg10[%c0_17, %c0_18], %21 {strides = array<i32>} : memref<16x32xf32, #tpu.memory_space<vmem>>, vector<16x32xf32>,
    } else {
    }
    %c0 = arith.constant 0 : index
    %c0_1 = arith.constant 0 : index
    %3 = vector.load %arg2[%c0, %c0_1] : memref<16x32xf32, #tpu.memory_space<vmem>>, vector<16x32xf32>
    %4 = arith.truncf %3 : vector<16x32xf32> to vector<16x32xbf16>
    %c0_2 = arith.constant 0 : index
    %c0_3 = arith.constant 0 : index
    %5 = vector.load %arg3[%c0_2, %c0_3] : memref<32x64xbf16, #tpu.memory_space<vmem>>, vector<32x64xbf16>
    %cst = arith.constant dense<0.000000e+00> : vector<16x64xf32>
    %6 = tpu.matmul %4, %5, %cst {dimension_numbers = #tpu.dot_dimension_numbers<[1], [0], [0], [1], [0, 0, 1, 1], [], []>} : vector<16x32xbf16>, vector<32x64xbf16>, vector<16x64xf32> -> vector<16x64xf32>
    %c0_4 = arith.constant 0 : index
    %c0_5 = arith.constant 0 : index
    %7 = vector.load %arg4[%c0_4, %c0_5] : memref<1x64xf32, #tpu.memory_space<vmem>>, vector<1x64xf32>
    %8 = vector.broadcast %7 : vector<1x64xf32> to vector<16x64xf32>
    %9 = arith.addf %6, %8 : vector<16x64xf32>
    %cst_6 = arith.constant 0.000000e+00 : f32
    %10 = vector.broadcast %cst_6 : f32 to vector<16x64xf32>
    %11 = arith.maximumf %9, %10 : vector<16x64xf32>
    %c0_7 = arith.constant 0 : index
    %c0_8 = arith.constant 0 : index
    %12 = vector.load %arg10[%c0_7, %c0_8] : memref<16x32xf32, #tpu.memory_space<vmem>>, vector<16x32xf32>
    %13 = arith.truncf %11 : vector<16x64xf32> to vector<16x64xbf16>
    %c0_9 = arith.constant 0 : index
    %c0_10 = arith.constant 0 : index
    %14 = vector.load %arg5[%c0_9, %c0_10] : memref<64x32xbf16, #tpu.memory_space<vmem>>, vector<64x32xbf16>
    %cst_11 = arith.constant dense<0.000000e+00> : vector<16x32xf32>
    %15 = tpu.matmul %13, %14, %cst_11 {dimension_numbers = #tpu.dot_dimension_numbers<[1], [0], [0], [1], [0, 0, 1, 1], [], []>} : vector<16x64xbf16>, vector<64x32xbf16>, vector<16x32xf32> -> vector<16x32xf32>
    %16 = arith.addf %12, %15 : vector<16x32xf32>
    %c0_12 = arith.constant 0 : index
    %c0_13 = arith.constant 0 : index
    %17 = vector.load %arg10[%c0_12, %c0_13] : memref<16x32xf32, #tpu.memory_space<vmem>>, vector<16x32xf32>
    tpu.vector_store %arg10[%c0_12, %c0_13], %16 {strides = array<i32>} : memref<16x32xf32, #tpu.memory_space<vmem>>, vector<16x32xf32>,
    %c0_i32_14 = arith.constant 0 : i32
    %18 = arith.cmpi eq, %arg1, %c0_i32_14 : i32
    %19 = arith.extui %18 : i1 to i32
    %c0_i32_15 = arith.constant 0 : i32
    %20 = arith.cmpi ne, %19, %c0_i32_15 : i32
    scf.if %20 {
      %c0_16 = arith.constant 0 : index
      %c0_17 = arith.constant 0 : index
      %21 = vector.load %arg2[%c0_16, %c0_17] : memref<16x32xf32, #tpu.memory_space<vmem>>, vector<16x32xf32>
      %c0_18 = arith.constant 0 : index
      %c0_19 = arith.constant 0 : index
      %22 = vector.load %arg10[%c0_18, %c0_19] : memref<16x32xf32, #tpu.memory_space<vmem>>, vector<16x32xf32>
      %c0_20 = arith.constant 0 : index
      %c0_21 = arith.constant 0 : index
      %23 = vector.load %arg6[%c0_20, %c0_21] : memref<1x32xf32, #tpu.memory_space<vmem>>, vector<1x32xf32>
      %24 = vector.broadcast %23 : vector<1x32xf32> to vector<16x32xf32>
      %25 = arith.addf %22, %24 : vector<16x32xf32>
      %26 = arith.addf %25, %21 : vector<16x32xf32>
      %cst_22 = arith.constant dense<0.000000e+00> : vector<16xf32>
      %27 = vector.multi_reduction <add>, %26, %cst_22 [1] : vector<16x32xf32> to vector<16xf32>
      %28 = vector.shape_cast %27 : vector<16xf32> to vector<16x1xf32>
      %cst_23 = arith.constant 3.125000e-02 : f32
      %29 = vector.broadcast %cst_23 : f32 to vector<16x1xf32>
      %30 = arith.mulf %28, %29 : vector<16x1xf32>
      %31 = vector.broadcast %30 : vector<16x1xf32> to vector<16x32xf32>
      %32 = arith.subf %26, %31 : vector<16x32xf32>
      %33 = arith.mulf %32, %32 : vector<16x32xf32>
      %cst_24 = arith.constant dense<0.000000e+00> : vector<16xf32>
      %34 = vector.multi_reduction <add>, %33, %cst_24 [1] : vector<16x32xf32> to vector<16xf32>
      %35 = vector.shape_cast %34 : vector<16xf32> to vector<16x1xf32>
      %cst_25 = arith.constant 3.125000e-02 : f32
      %36 = vector.broadcast %cst_25 : f32 to vector<16x1xf32>
      %37 = arith.mulf %35, %36 : vector<16x1xf32>
      %cst_26 = arith.constant 9.99999974E-6 : f32
      %38 = vector.broadcast %cst_26 : f32 to vector<16x1xf32>
      %39 = arith.addf %37, %38 : vector<16x1xf32>
      %40 = math.rsqrt %39 : vector<16x1xf32>
      %41 = vector.broadcast %40 : vector<16x1xf32> to vector<16x32xf32>
      %42 = arith.mulf %32, %41 : vector<16x32xf32>
      %c0_27 = arith.constant 0 : index
      %c0_28 = arith.constant 0 : index
      %43 = vector.load %arg7[%c0_27, %c0_28] : memref<1x32xf32, #tpu.memory_space<vmem>>, vector<1x32xf32>
      %44 = vector.broadcast %43 : vector<1x32xf32> to vector<16x32xf32>
      %45 = arith.mulf %42, %44 : vector<16x32xf32>
      %c0_29 = arith.constant 0 : index
      %c0_30 = arith.constant 0 : index
      %46 = vector.load %arg8[%c0_29, %c0_30] : memref<1x32xf32, #tpu.memory_space<vmem>>, vector<1x32xf32>
      %47 = vector.broadcast %46 : vector<1x32xf32> to vector<16x32xf32>
      %48 = arith.addf %45, %47 : vector<16x32xf32>
      %c0_31 = arith.constant 0 : index
      %c0_32 = arith.constant 0 : index
      %49 = vector.load %arg9[%c0_31, %c0_32] : memref<16x32xf32, #tpu.memory_space<vmem>>, vector<16x32xf32>
      tpu.vector_store %arg9[%c0_31, %c0_32], %48 {strides = array<i32>} : memref<16x32xf32, #tpu.memory_space<vmem>>, vector<16x32xf32>,
    } else {
    }
    return
  }
  func.func @transform_0(%arg0: i32, %arg1: i32) -> (i32, i32) {
    %c0_i32 = arith.constant 0 : i32
    %c0_i32_0 = arith.constant 0 : i32
    return %arg0, %c0_i32 : i32, i32
  }
  func.func @transform_1(%arg0: i32, %arg1: i32) -> (i32, i32) {
    %c0_i32 = arith.constant 0 : i32
    %c0_i32_0 = arith.constant 0 : i32
    return %c0_i32, %arg1 : i32, i32
  }
  func.func @transform_2(%arg0: i32, %arg1: i32) -> (i32, i32) {
    %c0_i32 = arith.constant 0 : i32
    %c0_i32_0 = arith.constant 0 : i32
    return %c0_i32, %arg1 : i32, i32
  }
  func.func @transform_3(%arg0: i32, %arg1: i32) -> (i32, i32) {
    %c0_i32 = arith.constant 0 : i32
    %c0_i32_0 = arith.constant 0 : i32
    return %arg1, %c0_i32 : i32, i32
  }
  func.func @transform_4(%arg0: i32, %arg1: i32) -> (i32, i32) {
    %c0_i32 = arith.constant 0 : i32
    %c0_i32_0 = arith.constant 0 : i32
    %c0_i32_1 = arith.constant 0 : i32
    return %c0_i32, %c0_i32_0 : i32, i32
  }
  func.func @transform_5(%arg0: i32, %arg1: i32) -> (i32, i32) {
    %c0_i32 = arith.constant 0 : i32
    %c0_i32_0 = arith.constant 0 : i32
    %c0_i32_1 = arith.constant 0 : i32
    return %c0_i32, %c0_i32_0 : i32, i32
  }
  func.func @transform_6(%arg0: i32, %arg1: i32) -> (i32, i32) {
    %c0_i32 = arith.constant 0 : i32
    %c0_i32_0 = arith.constant 0 : i32
    %c0_i32_1 = arith.constant 0 : i32
    return %c0_i32, %c0_i32_0 : i32, i32
  }
  func.func @transform_7(%arg0: i32, %arg1: i32) -> (i32, i32) {
    %c0_i32 = arith.constant 0 : i32
    %c0_i32_0 = arith.constant 0 : i32
    return %arg0, %c0_i32 : i32, i32
  }
}

</mosaic_0001>

<llo_original>
// kernel: tpu_custom_call.1
$region0: #{tpu_custom_call.1}
  #allocation0 [shape = 'u32[]', space=smem, size = 0x4, offset = 0x4, fixed_abs, tag = 'smem constant byte address 0x4 - core index']
  #allocation1 [shape = 'u32[72,128]{1,0:T(1,128)}', space=vmem, size = 0x9000, scoped, tag = 'internal scratch']
  #allocation2 [shape = 'f32[16,32]{1,0:T(8,128)}', space=vmem, size = 0x2000, scoped, tag = 'scratch operand']
  %s0 = inlined_call_operand.vmem [shape: f32[16,32], index: 0, kind: input, shape index: {}]
  %s1 = inlined_call_operand.vmem [shape: bf16[32,64], index: 1, kind: input, shape index: {}]
  %s2 = inlined_call_operand.vmem [shape: f32[1,64], index: 2, kind: input, shape index: {}]
  %s3 = inlined_call_operand.vmem [shape: bf16[64,32], index: 3, kind: input, shape index: {}]
  %s4 = inlined_call_operand.vmem [shape: f32[1,32], index: 4, kind: input, shape index: {}]
  %s5 = inlined_call_operand.vmem [shape: f32[1,32], index: 5, kind: input, shape index: {}]
  %s6 = inlined_call_operand.vmem [shape: f32[1,32], index: 6, kind: input, shape index: {}]
  %s7 = inlined_call_operand.hbm [shape: f32[16,32], index: 7, kind: output, shape index: {}]
  %s8 = sld [smem:[#allocation0]]
  $region46: #{tpu_custom_call.1} parent=0
    _
  %s10 = ssub.s32 1, %s8
  %s11 = scalar_select 0, %s10, %s8
  $region1: #{tpu_custom_call.1} parent=0
    #allocation3 [shape = 'u8[8192]{0}', space=vmem, size = 0x2000, scoped, tag = 'output window, operand 0, single buffered']
    #allocation4 [shape = 's32[1]{0}', space=sflag, size = 0x4, scoped, tag = 'scoped memory for tpu_custom_call.1']
    %12 = vsyncpa [#allocation4], 0
    // Predicated region
    $region2: #{tpu_custom_call.1} parent=1 // pred_check
      _
    $region3: #{tpu_custom_call.1} parent=1 // pred_check_branch
      %14 = sbr.rel (0) target = $region5
    $region4: #{tpu_custom_call.1} parent=1 // pred_region
      _
    $region5: #{tpu_custom_call.1} parent=1 // pred_fallthru
      _
    // Predicated region
    $region6: #{tpu_custom_call.1} parent=1 // pred_check
      _
    $region7: #{tpu_custom_call.1} parent=1 // pred_check_branch
      %16 = sbr.rel (0) target = $region9
    $region8: #{tpu_custom_call.1} parent=1 // pred_region
      _
    $region9: #{tpu_custom_call.1} parent=1 // pred_fallthru
      _
    // Predicated region
    $region10: #{tpu_custom_call.1} parent=1 // pred_check
      _
    $region11: #{tpu_custom_call.1} parent=1 // pred_check_branch
      %18 = sbr.rel (0) target = $region13
    $region12: #{tpu_custom_call.1} parent=1 // pred_region
      _
    $region13: #{tpu_custom_call.1} parent=1 // pred_fallthru
      _
    // Predicated region
    $region14: #{tpu_custom_call.1} parent=1 // pred_check
      _
    $region15: #{tpu_custom_call.1} parent=1 // pred_check_branch
      %20 = sbr.rel (0) target = $region17
    $region16: #{tpu_custom_call.1} parent=1 // pred_region
      _
    $region17: #{tpu_custom_call.1} parent=1 // pred_fallthru
      _
    // Predicated region
    $region18: #{tpu_custom_call.1} parent=1 // pred_check
      _
    $region19: #{tpu_custom_call.1} parent=1 // pred_check_branch
      %22 = sbr.rel (0) target = $region21
    $region20: #{tpu_custom_call.1} parent=1 // pred_region
      _
    $region21: #{tpu_custom_call.1} parent=1 // pred_fallthru
      _
    // Predicated region
    $region22: #{tpu_custom_call.1} parent=1 // pred_check
      _
    $region23: #{tpu_custom_call.1} parent=1 // pred_check_branch
      %24 = sbr.rel (0) target = $region25
    $region24: #{tpu_custom_call.1} parent=1 // pred_region
      _
    $region25: #{tpu_custom_call.1} parent=1 // pred_fallthru
      _
    // Predicated region
    $region26: #{tpu_custom_call.1} parent=1 // pred_check
      _
    $region27: #{tpu_custom_call.1} parent=1 // pred_check_branch
      %26 = sbr.rel (0) target = $region29
    $region28: #{tpu_custom_call.1} parent=1 // pred_region
      _
    $region29: #{tpu_custom_call.1} parent=1 // pred_fallthru
      _
    %p28 = scmp.eq.s32.totalorder 0, 0
    // Predicated region
    $region30: #{tpu_custom_call.1} parent=1 // pred_check
      %p29 = pneg %p28
    $region31: #{tpu_custom_call.1} parent=1 // pred_check_branch
      %31 = sbr.rel (%p29) target = $region33
    $region32: #{tpu_custom_call.1} parent=1 // pred_region
      %vm32 = vcmask 261120
      %33 = vst.msk [vmem:[#allocation2] sm:$0xff] %vm32, 0.0
      %34 = vst.msk [vmem:[#allocation2 + $0x8] sm:$0xff] %vm32, 0.0
    $region33: #{tpu_custom_call.1} parent=1 // pred_fallthru
      _
    %v35 = vld [vmem:[%s0] sm:$0xff]
    %v36 = vld [vmem:[%s0 + $0x8] sm:$0xff]
    %v37 = vpack.c.bf16 %v36, %v35
    %v38 = vld [vmem:[%s1] sm:$0xf]
    %v39 = vld [vmem:[%s1 + $0x4] sm:$0xf]
    %v40 = vld [vmem:[%s1 + $0x8] sm:$0xf]
    %v41 = vld [vmem:[%s1 + $0xc] sm:$0xf]
    %v42 = vld [vmem:[%s2] sm:$0x1]
    %v44 = vperm.slane %v42, 0
    %v50 = vunpack.c.l.b16 %v38
    %v51 = vunpack.c.l.b16 %v39
    %v52 = vunpack.c.l.b16 %v40
    %v53 = vunpack.c.l.b16 %v41
    %v54 = vpack.c.b16 %v51, %v50
    %v55 = vpack.c.b16 %v53, %v52
    %vm58 = vcmask 261120
    %v60 = vsel %vm58, %v37, 0
    %62 = vmatpush.bf16.msra.mxu0 0
    %63 = vmatpush.bf16.msra.mxu0 0
    %64 = vmatpush.bf16.msra.mxu0 0
    %65 = vmatpush.bf16.msra.mxu0 0
    %66 = vmatpush.bf16.msra.mxu0 0
    %67 = vmatpush.bf16.msra.mxu0 0
    %68 = vmatpush.bf16.msra.mxu0 %v55
    %69 = vmatpush.bf16.msra.mxu0 %v54
    %70 = vmatmul.bf16.gmra.mxu0 %v60
    %v71 = vpop.f32.mrf.mxu0
    %v72 = vadd.f32 %v44, %v71
    %v73 = vpop.f32.mrf.mxu0
    %v74 = vadd.f32 %v44, %v73
    %75 = vdwg.mxu0
    %v76 = vmax.f32 %v72, 0.0
    %v77 = vmax.f32 %v74, 0.0
    %v78 = vld [vmem:[#allocation2] sm:$0xff]
    %v79 = vld [vmem:[#allocation2 + $0x8] sm:$0xff]
    %v80 = vpack.c.bf16 %v77, %v76
    %v81 = vld [vmem:[%s3] sm:$0xf]
    %v82 = vld [vmem:[%s3 + $0x4] sm:$0xf]
    %v83 = vld [vmem:[%s3 + $0x8] sm:$0xf]
    %v84 = vld [vmem:[%s3 + $0xc] sm:$0xf]
    %v85 = vld [vmem:[%s3 + $0x10] sm:$0xf]
    %v86 = vld [vmem:[%s3 + $0x14] sm:$0xf]
    %v87 = vld [vmem:[%s3 + $0x18] sm:$0xf]
    %v88 = vld [vmem:[%s3 + $0x1c] sm:$0xf]
    %v97 = vunpack.c.l.b16 %v81
    %v98 = vunpack.c.l.b16 %v82
    %v99 = vunpack.c.l.b16 %v83
    %v100 = vunpack.c.l.b16 %v84
    %v101 = vunpack.c.l.b16 %v85
    %v102 = vunpack.c.l.b16 %v86
    %v103 = vunpack.c.l.b16 %v87
    %v104 = vunpack.c.l.b16 %v88
    %v105 = vpack.c.b16 %v98, %v97
    %v106 = vpack.c.b16 %v100, %v99
    %v107 = vpack.c.b16 %v102, %v101
    %v108 = vpack.c.b16 %v104, %v103
    %vm113 = vcmask 523264
    %v115 = vsel %vm113, %v80, 0
    %117 = vmatpush.bf16.msra.mxu0 0
    %118 = vmatpush.bf16.msra.mxu0 0
    %119 = vmatpush.bf16.msra.mxu0 0
    %120 = vmatpush.bf16.msra.mxu0 0
    %121 = vmatpush.bf16.msra.mxu0 %v108
    %122 = vmatpush.bf16.msra.mxu0 %v107
    %123 = vmatpush.bf16.msra.mxu0 %v106
    %124 = vmatpush.bf16.msra.mxu0 %v105
    %125 = vmatmul.bf16.gmra.mxu0 %v115
    %v126 = vpop.f32.mrf.mxu0
    %v127 = vadd.f32 0.0, %v126
    %v128 = vpop.f32.mrf.mxu0
    %v129 = vadd.f32 0.0, %v128
    %130 = vdwg.mxu0
    %v131 = vadd.f32 %v78, %v127
    %v132 = vadd.f32 %v79, %v129
    %133 = vst.msk [vmem:[#allocation2] sm:$0xff] %vm58, %v131
    %134 = vst.msk [vmem:[#allocation2 + $0x8] sm:$0xff] %vm58, %v132
    // Predicated region
    $region34: #{tpu_custom_call.1} parent=1 // pred_check
      %p135 = pneg %p28
    $region35: #{tpu_custom_call.1} parent=1 // pred_check_branch
      %137 = sbr.rel (%p135) target = $region37
    $region36: #{tpu_custom_call.1} parent=1 // pred_region
      %v138 = vld [vmem:[%s0] sm:$0xff]
      %v139 = vld [vmem:[%s0 + $0x8] sm:$0xff]
      %v140 = vld [vmem:[#allocation2] sm:$0xff]
      %v141 = vld [vmem:[#allocation2 + $0x8] sm:$0xff]
      %v142 = vld [vmem:[%s4] sm:$0x1]
      %v144 = vperm.slane %v142, 0
      %v146 = vadd.f32 %v140, %v144
      %v147 = vadd.f32 %v141, %v144
      %v148 = vadd.f32 %v146, %v138
      %v149 = vadd.f32 %v147, %v139
      %v150 = vsel %vm58, %v148, 0.0
      %151 = vadd.xlane.f32.xlu0 %v150
      %v152 = vpop.xlane.xlu0 %151
      %v153 = vsel %vm58, %v149, 0.0
      %154 = vadd.xlane.f32.xlu0 %v153
      %v155 = vpop.xlane.xlu0 %154
      %v156 = vmul.f32 %v152, 0.03125
      %v157 = vmul.f32 %v155, 0.03125
      %v158 = vsub.f32 %v148, %v156
      %v159 = vsub.f32 %v149, %v157
      %v160 = vmul.f32 %v158, %v158
      %v161 = vmul.f32 %v159, %v159
      %v162 = vsel %vm58, %v160, 0.0
      %163 = vadd.xlane.f32.xlu0 %v162
      %v164 = vpop.xlane.xlu0 %163
      %v165 = vsel %vm58, %v161, 0.0
      %166 = vadd.xlane.f32.xlu0 %v165
      %v167 = vpop.xlane.xlu0 %166
      %v168 = vmul.f32 %v164, 0.03125
      %v169 = vmul.f32 %v167, 0.03125
      %v170 = vadd.f32 %v168, 1e-05
      %v171 = vadd.f32 %v169, 1e-05
      %v172 = vrsqrt.pop %v170
      %v173 = vmul.f32 %v172, %v170
      %v174 = vmul.f32 %v173, %v172
      %v175 = vmul.f32 0.5, %v174
      %v176 = vsub.f32 1.5, %v175
      %v177 = vmul.f32 %v172, %v176
      %vm178 = vweird.f32 %v170
      %vm179 = vweird.f32 %v172
      %vm180 = vmor %vm178, %vm179
      %v181 = vsel %vm180, %v172, %v177
      %v182 = vrsqrt.pop %v171
      %v183 = vmul.f32 %v182, %v171
      %v184 = vmul.f32 %v183, %v182
      %v185 = vmul.f32 0.5, %v184
      %v186 = vsub.f32 1.5, %v185
      %v187 = vmul.f32 %v182, %v186
      %vm188 = vweird.f32 %v171
      %vm189 = vweird.f32 %v182
      %vm190 = vmor %vm188, %vm189
      %v191 = vsel %vm190, %v182, %v187
      %v192 = vmul.f32 %v158, %v181
      %v193 = vmul.f32 %v159, %v191
      %v194 = vld [vmem:[%s5] sm:$0x1]
      %v196 = vperm.slane %v194, 0
      %v198 = vmul.f32 %v192, %v196
      %v199 = vmul.f32 %v193, %v196
      %v200 = vld [vmem:[%s6] sm:$0x1]
      %v202 = vperm.slane %v200, 0
      %v204 = vadd.f32 %v198, %v202
      %v205 = vadd.f32 %v199, %v202
      %206 = vst.msk [vmem:[#allocation3] sm:$0xff] %vm58, %v204
      %207 = vst.msk [vmem:[#allocation3 + $0x8] sm:$0xff] %vm58, %v205
    $region37: #{tpu_custom_call.1} parent=1 // pred_fallthru
      _
    // Predicated region
    $region38: #{tpu_custom_call.1} parent=1 // pred_check
      _
    $region39: #{tpu_custom_call.1} parent=1 // pred_check_branch
      %209 = sbr.rel (0) target = $region41
    $region40: #{tpu_custom_call.1} parent=1 // pred_region
      %211 = vsyncadd [#allocation4], 0
      %s212 = sshll.u32 [#allocation3], 4
      %s213 = int_to_ptr.vmem [resolvable:$true] %s212
      %s214 = sshll.u32 %s7, 4
      %s215 = int_to_ptr.hbm [resolvable:$true] %s214
      %220 = dma.vmem_to_hbm [thread:$0]  %s213, 256, %s215, [#allocation4], 128, 128, 8
    $region41: #{tpu_custom_call.1} parent=1 // pred_fallthru
      _
    // Predicated region
    $region42: #{tpu_custom_call.1} parent=1 // pred_check
      _
    $region43: #{tpu_custom_call.1} parent=1 // pred_check_branch
      %222 = sbr.rel (0) target = $region45
    $region44: #{tpu_custom_call.1} parent=1 // pred_region
      %224 = dma.done [#allocation4], 256
    $region45: #{tpu_custom_call.1} parent=1 // pred_fallthru
      _
    %225 = vsyncpa [#allocation4], 1

</llo_original>
